<compile_context>
chip_gen: v7x
topology: tpu7x:2x2x1
jax: 0.10.0
libtpu: 0.0.40
codegen_flags: <defaults>
</compile_context>

<pallas_src>
import jax
import jax.numpy as jnp
from jax import lax
from jax.experimental import pallas as pl
from jax.experimental.pallas import tpu as pltpu


# ----------------------------- Pallas kernel --------------------------------

def attention_kernel(x_ref, wqkv_ref, bqkv_ref, o_ref):
    """Fused causal self-attention for one block of batch elements.

    x_ref    : VMEM (bb, T, C)  f32
    wqkv_ref : VMEM (C, 3C)     bf16   ([wq/sqrt(C) | wk | wv], y = x @ W)
    bqkv_ref : VMEM (1, 3C)     f32    ([bq/sqrt(C) | bk | bv])
    o_ref    : VMEM (bb*T, C)   f32
    """
    bb, T, C = x_ref.shape

    # Fused QKV projection: one MXU matmul over the whole (bb*T, C) block,
    # bf16 operands with f32 accumulation; bias add stays f32.
    xf = x_ref[...].reshape(bb * T, C).astype(jnp.bfloat16)
    qkv = jnp.dot(xf, wqkv_ref[...], preferred_element_type=jnp.float32)
    qkv = qkv + bqkv_ref[...]
    q = qkv[:, :C]               # already scaled by 1/sqrt(C) (folded into weights)
    k = qkv[:, C:2 * C]
    v = qkv[:, 2 * C:]

    # Causal mask from 2-D iota (no mask buffer DMA).
    row = lax.broadcasted_iota(jnp.int32, (T, T), 0)
    col = lax.broadcasted_iota(jnp.int32, (T, T), 1)
    causal = col <= row

    for b in range(bb):          # static, tiny unroll over batch elems in the block
        kb = k[b * T:(b + 1) * T].astype(jnp.bfloat16)
        qb = q[b * T:(b + 1) * T].astype(jnp.bfloat16)
        vb = v[b * T:(b + 1) * T].astype(jnp.bfloat16)

        # scores[i, j] = <k_i, q_j / sqrt(C)>  ==  (k @ movedim(q, 1, 2)) / sqrt(C)
        s = lax.dot_general(kb, qb, (((1,), (1,)), ((), ())),
                            preferred_element_type=jnp.float32)
        # Large finite negative: exp underflows to exactly 0, same as float('-inf').
        s = jnp.where(causal, s, -1e30)

        # Numerically stable softmax (f32 on VPU; reciprocal on the EUP slot).
        m = jnp.max(s, axis=-1, keepdims=True)
        e = jnp.exp(s - m)
        p = e * pl.reciprocal(jnp.sum(e, axis=-1, keepdims=True), approx=True)

        # Output contraction (MXU) -> contiguous slab store.
        o_ref[b * T:(b + 1) * T, :] = jnp.dot(p.astype(jnp.bfloat16), vb,
                                              preferred_element_type=jnp.float32)


# ------------------------------ JAX wrapper ----------------------------------

def fuse_params(params):
    """One-time static transform: concat Q/K/V weights and fold 1/sqrt(C) into Q."""
    wq, bq, wk, bk, wv, bv = params
    C = wq.shape[0]
    scale = 1.0 / (C ** 0.5)
    w_qkv = jnp.concatenate([wq * scale, wk, wv], axis=1).astype(jnp.bfloat16)
    b_qkv = jnp.concatenate([bq * scale, bk, bv], axis=1).astype(jnp.float32)
    return w_qkv, b_qkv


def attention_forward(x, fused_params, *, num_batch_blocks=None):
    """x: (B, T, C) f32 -> (B, T, C) f32."""
    B, T, C = x.shape
    w_qkv, b_qkv = fused_params
    if num_batch_blocks is None:
        # Default 2 "parallel" steps so both v7x TensorCores get work;
        # use 1 on v5e/v6e (single TC) to minimize per-step overhead.
        num_batch_blocks = 2 if (B >= 2 and B % 2 == 0) else 1
    assert B % num_batch_blocks == 0
    bb = B // num_batch_blocks

    out_flat = pl.pallas_call(
        attention_kernel,
        out_shape=jax.ShapeDtypeStruct((B * T, C), jnp.float32),
        grid=(num_batch_blocks,),
        in_specs=[
            pl.BlockSpec((bb, T, C), lambda i: (i, 0, 0)),   # activation block
            pl.BlockSpec((C, 3 * C), lambda i: (0, 0)),      # fused weights, VMEM-resident
            pl.BlockSpec((1, 3 * C), lambda i: (0, 0)),      # fused bias, VMEM-resident
        ],
        out_specs=pl.BlockSpec((bb * T, C), lambda i: (i, 0)),
        compiler_params=pltpu.CompilerParams(
            dimension_semantics=("parallel",)),               # megacore sharding on v7x
    )(x, w_qkv, b_qkv)
    return out_flat.reshape(B, T, C)


# ----------------------------- parameter setup -------------------------------

def init_params(key, layer_size):
    """Mimic PyTorch Linear default init U(-1/sqrt(fan_in), 1/sqrt(fan_in)).

    Weights are stored transposed ((in, out)) so y = x @ W; biases as (1, out).
    """
    def linear(k, fan_in, fan_out):
        kw, kb = jax.random.split(k)
        bound = 1.0 / (fan_in ** 0.5)
        w = jax.random.uniform(kw, (fan_in, fan_out), jnp.float32, -bound, bound)
        b = jax.random.uniform(kb, (1, fan_out), jnp.float32, -bound, bound)
        return w, b

    kq, kk, kv = jax.random.split(key, 3)
    wq, bq = linear(kq, layer_size, layer_size)
    wk, bk = linear(kk, layer_size, layer_size)
    wv, bv = linear(kv, layer_size, layer_size)
    return wq, bq, wk, bk, wv, bv


def reference_attention(x, params):
    """Pure-JAX f32 mirror of the PyTorch forward (for the sanity check)."""
    wq, bq, wk, bk, wv, bv = params
    B, T, C = x.shape
    q = x @ wq + bq
    k = x @ wk + bk
    v = x @ wv + bv
    scores = jnp.einsum('bic,bjc->bij', k, q) / (C ** 0.5)      # k @ movedim(q, 1, 2)
    causal = jnp.tril(jnp.ones((T, T), dtype=bool))
    scores = jnp.where(causal[None, :, :], scores, -jnp.inf)
    attn = jax.nn.softmax(scores, axis=-1)
    return jnp.einsum('bij,bjc->bic', attn, v)


# ---------------------------------- main -------------------------------------

if __name__ == "__main__":
    key = jax.random.PRNGKey(0)
    k_params, k_x = jax.random.split(key)

    B, T = 2, 8                 # batch, sequence length
    layer_size = 32             # C
    block_size = 8              # mask buffer size in the module; requires T <= block_size
    assert T <= block_size

    params = init_params(k_params, layer_size)
    fused = fuse_params(params)                   # static weight fusion + scale fold
    x = jax.random.normal(k_x, (B, T, layer_size), jnp.float32)

    out = attention_forward(x, fused)
    out = jax.block_until_ready(out)

    ref = reference_attention(x, params)

    assert out.shape == (B, T, layer_size), out.shape
    assert bool(jnp.all(jnp.isfinite(out))), "non-finite values in output"
    # bf16 MXU operands with f32 accumulation -> slightly looser tolerance than pure f32.
    assert jnp.allclose(out, ref, atol=2.5e-2, rtol=2.5e-2), "mismatch vs reference"

    print("KERNEL_OK")
</pallas_src>

<mosaic_0001>
module attributes {stable_mosaic.version = 11 : i64} {
  func.func @attention_kernel(%arg0: i32, %arg1: memref<1x8x32xf32, #tpu.memory_space<vmem>>, %arg2: memref<32x96xbf16, #tpu.memory_space<vmem>>, %arg3: memref<1x96xf32, #tpu.memory_space<vmem>>, %arg4: memref<8x32xf32, #tpu.memory_space<vmem>>) attributes {dimension_semantics = [#tpu.dimension_semantics<parallel>], iteration_bounds = array<i64: 2>, scalar_prefetch = 0 : i64, scratch_operands = 0 : i64, tpu.core_type = #tpu.core_type<tc>, window_params = [{transform_indices = @transform_0, window_bounds = array<i64: 1, 8, 32>}, {pipeline_mode = #tpu.pipeline_mode<synchronous>, transform_indices = @transform_1, window_bounds = array<i64: 32, 96>}, {pipeline_mode = #tpu.pipeline_mode<synchronous>, transform_indices = @transform_2, window_bounds = array<i64: 1, 96>}, {transform_indices = @transform_3, window_bounds = array<i64: 8, 32>}]} {
    %c0 = arith.constant 0 : index
    %c0_0 = arith.constant 0 : index
    %c0_1 = arith.constant 0 : index
    %0 = vector.load %arg1[%c0, %c0_0, %c0_1] : memref<1x8x32xf32, #tpu.memory_space<vmem>>, vector<1x8x32xf32>
    %1 = vector.shape_cast %0 : vector<1x8x32xf32> to vector<8x32xf32>
    %2 = arith.truncf %1 : vector<8x32xf32> to vector<8x32xbf16>
    %c0_2 = arith.constant 0 : index
    %c0_3 = arith.constant 0 : index
    %3 = vector.load %arg2[%c0_2, %c0_3] : memref<32x96xbf16, #tpu.memory_space<vmem>>, vector<32x96xbf16>
    %cst = arith.constant dense<0.000000e+00> : vector<8x96xf32>
    %4 = tpu.matmul %2, %3, %cst {dimension_numbers = #tpu.dot_dimension_numbers<[1], [0], [0], [1], [0, 0, 1, 1], [], []>} : vector<8x32xbf16>, vector<32x96xbf16>, vector<8x96xf32> -> vector<8x96xf32>
    %c0_4 = arith.constant 0 : index
    %c0_5 = arith.constant 0 : index
    %5 = vector.load %arg3[%c0_4, %c0_5] : memref<1x96xf32, #tpu.memory_space<vmem>>, vector<1x96xf32>
    %6 = vector.broadcast %5 : vector<1x96xf32> to vector<8x96xf32>
    %7 = arith.addf %4, %6 : vector<8x96xf32>
    %8 = vector.extract_strided_slice %7 {offsets = [0, 0], sizes = [8, 32], strides = [1, 1]} : vector<8x96xf32> to vector<8x32xf32>
    %9 = vector.extract_strided_slice %7 {offsets = [0, 32], sizes = [8, 32], strides = [1, 1]} : vector<8x96xf32> to vector<8x32xf32>
    %10 = vector.extract_strided_slice %7 {offsets = [0, 64], sizes = [8, 32], strides = [1, 1]} : vector<8x96xf32> to vector<8x32xf32>
    %11 = tpu.iota {dimensions = array<i32: 0>} : vector<8x8xi32>
    %12 = tpu.iota {dimensions = array<i32: 1>} : vector<8x8xi32>
    %13 = arith.cmpi sle, %12, %11 : vector<8x8xi32>
    %14 = arith.truncf %9 : vector<8x32xf32> to vector<8x32xbf16>
    %15 = arith.truncf %8 : vector<8x32xf32> to vector<8x32xbf16>
    %16 = arith.truncf %10 : vector<8x32xf32> to vector<8x32xbf16>
    %cst_6 = arith.constant dense<0.000000e+00> : vector<8x8xf32>
    %17 = tpu.matmul %14, %15, %cst_6 {dimension_numbers = #tpu.dot_dimension_numbers<[1], [1], [0], [0], [0, 0, 1, 0], [], []>} : vector<8x32xbf16>, vector<8x32xbf16>, vector<8x8xf32> -> vector<8x8xf32>
    %cst_7 = arith.constant -1.000000e+30 : f32
    %18 = vector.broadcast %cst_7 : f32 to vector<8x8xf32>
    %19 = arith.select %13, %17, %18 : vector<8x8xi1>, vector<8x8xf32>
    %cst_8 = arith.constant dense<0xFF800000> : vector<8xf32>
    %20 = vector.multi_reduction <maximumf>, %19, %cst_8 [1] : vector<8x8xf32> to vector<8xf32>
    %21 = vector.shape_cast %20 : vector<8xf32> to vector<8x1xf32>
    %22 = vector.broadcast %21 : vector<8x1xf32> to vector<8x8xf32>
    %23 = arith.subf %19, %22 : vector<8x8xf32>
    %24 = math.exp %23 : vector<8x8xf32>
    %cst_9 = arith.constant dense<0.000000e+00> : vector<8xf32>
    %25 = vector.multi_reduction <add>, %24, %cst_9 [1] : vector<8x8xf32> to vector<8xf32>
    %26 = vector.shape_cast %25 : vector<8xf32> to vector<8x1xf32>
    %27 = tpu.reciprocal %26 {approx = true} : vector<8x1xf32> -> vector<8x1xf32>
    %28 = vector.broadcast %27 : vector<8x1xf32> to vector<8x8xf32>
    %29 = arith.mulf %24, %28 : vector<8x8xf32>
    %30 = arith.truncf %29 : vector<8x8xf32> to vector<8x8xbf16>
    %cst_10 = arith.constant dense<0.000000e+00> : vector<8x32xf32>
    %31 = tpu.matmul %30, %16, %cst_10 {dimension_numbers = #tpu.dot_dimension_numbers<[1], [0], [0], [1], [0, 0, 1, 1], [], []>} : vector<8x8xbf16>, vector<8x32xbf16>, vector<8x32xf32> -> vector<8x32xf32>
    %c0_11 = arith.constant 0 : index
    %c0_12 = arith.constant 0 : index
    %32 = vector.load %arg4[%c0_11, %c0_12] : memref<8x32xf32, #tpu.memory_space<vmem>>, vector<8x32xf32>
    tpu.vector_store %arg4[%c0_11, %c0_12], %31 {strides = array<i32>} : memref<8x32xf32, #tpu.memory_space<vmem>>, vector<8x32xf32>,
    return
  }
  func.func @transform_0(%arg0: i32) -> (i32, i32, i32) {
    %c0_i32 = arith.constant 0 : i32
    %c0_i32_0 = arith.constant 0 : i32
    %c0_i32_1 = arith.constant 0 : i32
    return %arg0, %c0_i32, %c0_i32_0 : i32, i32, i32
  }
  func.func @transform_1(%arg0: i32) -> (i32, i32) {
    %c0_i32 = arith.constant 0 : i32
    %c0_i32_0 = arith.constant 0 : i32
    %c0_i32_1 = arith.constant 0 : i32
    return %c0_i32, %c0_i32_0 : i32, i32
  }
  func.func @transform_2(%arg0: i32) -> (i32, i32) {
    %c0_i32 = arith.constant 0 : i32
    %c0_i32_0 = arith.constant 0 : i32
    %c0_i32_1 = arith.constant 0 : i32
    return %c0_i32, %c0_i32_0 : i32, i32
  }
  func.func @transform_3(%arg0: i32) -> (i32, i32) {
    %c0_i32 = arith.constant 0 : i32
    %c0_i32_0 = arith.constant 0 : i32
    return %arg0, %c0_i32 : i32, i32
  }
}

</mosaic_0001>

<llo_original>
// kernel: tpu_custom_call.1
$region0: #{tpu_custom_call.1}
  #allocation0 [shape = 'u32[]', space=smem, size = 0x4, offset = 0x4, fixed_abs, tag = 'smem constant byte address 0x4 - core index']
  #allocation1 [shape = 'u32[144,128]{1,0:T(1,128)}', space=vmem, size = 0x12000, scoped, tag = 'internal scratch']
  %s0 = inlined_call_operand.hbm [shape: f32[2,8,32], index: 0, kind: input, shape index: {}]
  %s1 = inlined_call_operand.hbm [shape: bf16[32,96], index: 1, kind: input, shape index: {}]
  %s2 = inlined_call_operand.vmem [shape: f32[1,96], index: 2, kind: input, shape index: {}]
  %s3 = inlined_call_operand.hbm [shape: f32[16,32], index: 3, kind: output, shape index: {}]
  %s4 = sld [smem:[#allocation0]]
  $region53: #{tpu_custom_call.1} parent=0
    _
  %s6 = ssub.s32 1, %s4
  %s7 = scalar_select 0, %s6, %s4
  $region1: #{tpu_custom_call.1} parent=0
    #allocation2 [shape = 'u8[8192]{0}', space=vmem, size = 0x2000, scoped, tag = 'input window, operand 0']
    #allocation3 [shape = 's32[2]{0}', space=sflag, size = 0x8, scoped, tag = 'scoped memory for tpu_custom_call.1']
    #allocation4 [shape = 's32[2]{0}', space=sflag, size = 0x8, scoped, tag = 'scoped memory for tpu_custom_call.1']
    #allocation5 [shape = 'u8[8192]{0}', space=vmem, size = 0x2000, scoped, tag = 'input window, operand 1, single buffered']
    #allocation6 [shape = 's32[1]{0}', space=sflag, size = 0x4, scoped, tag = 'scoped memory for tpu_custom_call.1']
    #allocation7 [shape = 'u8[8192]{0}', space=vmem, size = 0x2000, scoped, tag = 'output window, operand 0']
    %8 = vsyncpa [#allocation3], 0
    %s9 = scalar_lea.sflag [#allocation3], 1
    %10 = vsyncpa %s9, 0
    %11 = vsyncpa [#allocation6], 0
    %12 = vsyncpa [#allocation4], 0
    %s13 = scalar_lea.sflag [#allocation4], 1
    %14 = vsyncpa %s13, 0
    loop: start=0, step=1, limit=4
    $region2: #{tpu_custom_call.1} parent=1 // loop_pre_header
      _
    $region3: #{tpu_custom_call.1} parent=1 // loop_header
      %s16 = sphi 0, %s20
      %p17 = scmp.ge.s32.totalorder %s16, 4
      %s26 = sphi 0, %s28
      %s29 = sphi 0, %s26
      %s30 = sphi 0, %s29
      %s46 = sphi 0, %s30
      %s50 = sphi 0, %s50
      %s52 = sphi 0, %s50
      %s53 = sphi 0, %s52
      %s67 = sphi 0, %s53
      %s71 = sphi 0, %s71
      %s73 = sphi 0, %s71
      %s74 = sphi 0, %s73
      %s88 = sphi 0, %s74
      %s94 = sphi 0, %s96
      %s97 = sphi 0, %s94
      %s98 = sphi 0, %s97
      %s114 = sphi 0, %s98
    $region4: #{tpu_custom_call.1} parent=1 // loop_header_branch
      %19 = sbr.rel (%p17) target = $region8
    $region5: #{tpu_custom_call.1} parent=1 // loop_body
      %s21 = ssub.s32 %s16, 1
      %s22 = ssub.s32 %s16, 2
      %s23 = sadd.s32 %s16, 1
      %s24 = ssub.s32 %s16, %s23
      %p25 = scmp.eq.s32.totalorder %s24, 0
      %s27 = sadd.s32 %s26, 1
      %s28 = scalar_select %p25, %s26, %s27
      %p31 = pneg %p25
      %p32 = scmp.eq.s32.totalorder %s16, 1
      %p33 = por %p31, %p32
      %p34 = scmp.ne.s32.totalorder %s26, %s29
      %p35 = scmp.eq.s32.totalorder %s16, 0
      %p36 = por %p34, %p35
      %p37 = scmp.ne.s32.totalorder %s26, %s29
      %p38 = scmp.eq.s32.totalorder %s21, 1
      %p39 = por %p37, %p38
      %p40 = scmp.ne.s32.totalorder %s29, %s30
      %p41 = scmp.eq.s32.totalorder %s21, 0
      %p42 = por %p40, %p41
      %p43 = scmp.ne.s32.totalorder %s29, %s30
      %p44 = scmp.eq.s32.totalorder %s22, 1
      %p45 = por %p43, %p44
      %p47 = scmp.ne.s32.totalorder %s30, %s46
      %p48 = scmp.eq.s32.totalorder %s22, 0
      %p49 = por %p47, %p48
      %s51 = sadd.s32 %s50, 1
      %p54 = scmp.eq.s32.totalorder %s16, 1
      %p55 = scmp.ne.s32.totalorder %s50, %s52
      %p56 = scmp.eq.s32.totalorder %s16, 0
      %p57 = por %p55, %p56
      %p58 = scmp.ne.s32.totalorder %s50, %s52
      %p59 = scmp.eq.s32.totalorder %s21, 1
      %p60 = por %p58, %p59
      %p61 = scmp.ne.s32.totalorder %s52, %s53
      %p62 = scmp.eq.s32.totalorder %s21, 0
      %p63 = por %p61, %p62
      %p64 = scmp.ne.s32.totalorder %s52, %s53
      %p65 = scmp.eq.s32.totalorder %s22, 1
      %p66 = por %p64, %p65
      %p68 = scmp.ne.s32.totalorder %s53, %s67
      %p69 = scmp.eq.s32.totalorder %s22, 0
      %p70 = por %p68, %p69
      %s72 = sadd.s32 %s71, 1
      %p75 = scmp.eq.s32.totalorder %s16, 1
      %p76 = scmp.ne.s32.totalorder %s71, %s73
      %p77 = scmp.eq.s32.totalorder %s16, 0
      %p78 = por %p76, %p77
      %p79 = scmp.ne.s32.totalorder %s71, %s73
      %p80 = scmp.eq.s32.totalorder %s21, 1
      %p81 = por %p79, %p80
      %p82 = scmp.ne.s32.totalorder %s73, %s74
      %p83 = scmp.eq.s32.totalorder %s21, 0
      %p84 = por %p82, %p83
      %p85 = scmp.ne.s32.totalorder %s73, %s74
      %p86 = scmp.eq.s32.totalorder %s22, 1
      %p87 = por %p85, %p86
      %p89 = scmp.ne.s32.totalorder %s74, %s88
      %p90 = scmp.eq.s32.totalorder %s22, 0
      %p91 = por %p89, %p90
      %s92 = ssub.s32 %s16, %s23
      %p93 = scmp.eq.s32.totalorder %s92, 0
      %s95 = sadd.s32 %s94, 1
      %s96 = scalar_select %p93, %s94, %s95
      %p99 = pneg %p93
      %p100 = scmp.eq.s32.totalorder %s16, 1
      %p101 = por %p99, %p100
      %p102 = scmp.ne.s32.totalorder %s94, %s97
      %p103 = scmp.eq.s32.totalorder %s16, 0
      %p104 = por %p102, %p103
      %p105 = scmp.ne.s32.totalorder %s94, %s97
      %p106 = scmp.eq.s32.totalorder %s21, 1
      %p107 = por %p105, %p106
      %p108 = scmp.ne.s32.totalorder %s97, %s98
      %p109 = scmp.eq.s32.totalorder %s21, 0
      %p110 = por %p108, %p109
      %p111 = scmp.ne.s32.totalorder %s97, %s98
      %p112 = scmp.eq.s32.totalorder %s22, 1
      %p113 = por %p111, %p112
      %p115 = scmp.ne.s32.totalorder %s98, %s114
      %p116 = scmp.eq.s32.totalorder %s22, 0
      %p117 = por %p115, %p116
      %p118 = scmp.le.s32.totalorder 1, %s16
      %p119 = scmp.lt.s32.totalorder %s16, 3
      %p120 = pnand %p118, %p119
      %p121 = pneg %p120
      // Predicated region
      $region9: #{tpu_custom_call.1} parent=5 // pred_check
        _
      $region10: #{tpu_custom_call.1} parent=5 // pred_check_branch
        %123 = sbr.rel (%p120) target = $region12
      $region11: #{tpu_custom_call.1} parent=5 // pred_region
        %s124 = ssub.s32 %s16, 1
        // Predicated region
        $region13: #{tpu_custom_call.1} parent=11 // pred_check
          %p125 = pneg %p63
        $region14: #{tpu_custom_call.1} parent=11 // pred_check_branch
          %127 = sbr.rel (%p125) target = $region16
        $region15: #{tpu_custom_call.1} parent=11 // pred_region
          %s129 = ssub.s32 256, 256
          %130 = vsyncadd [#allocation6], %s129
          %s131 = sshll.u32 [#allocation5], 4
          %s132 = int_to_ptr.vmem [resolvable:$true] %s131
          %137 = dma.hbm_to_vmem [thread:$0]  %s1, 256, %s132, [#allocation6], 64, 64, 4
        $region16: #{tpu_custom_call.1} parent=11 // pred_fallthru
          _
        // Predicated region
        $region17: #{tpu_custom_call.1} parent=11 // pred_check
          %p138 = pneg %p84
        $region18: #{tpu_custom_call.1} parent=11 // pred_check_branch
          %140 = sbr.rel (%p138) target = $region20
        $region19: #{tpu_custom_call.1} parent=11 // pred_region
          _
        $region20: #{tpu_custom_call.1} parent=11 // pred_fallthru
          _
      $region12: #{tpu_custom_call.1} parent=5 // pred_fallthru
        _
      %p141 = scmp.lt.s32.totalorder %s16, 2
      // Predicated region
      $region21: #{tpu_custom_call.1} parent=5 // pred_check
        %p142 = pneg %p141
      $region22: #{tpu_custom_call.1} parent=5 // pred_check_branch
        %144 = sbr.rel (%p142) target = $region24
      $region23: #{tpu_custom_call.1} parent=5 // pred_region
        // Predicated region
        $region25: #{tpu_custom_call.1} parent=23 // pred_check
          %p145 = pneg %p36
        $region26: #{tpu_custom_call.1} parent=23 // pred_check_branch
          %147 = sbr.rel (%p145) target = $region28
        $region27: #{tpu_custom_call.1} parent=23 // pred_region
          %s148 = sand.u32 %s26, 1
          %s149 = scalar_lea.sflag [#allocation3], %s148
          %s150 = sand.u32 %s26, 1
          %s151 = smul.addr %s150, 8
          %s152 = scalar_lea.vmem [#allocation2], %s151
          %s154 = ssub.s32 128, 128
          %155 = vsyncadd %s149, %s154
          %s156 = smul.addr %s16, 128
          %s157 = scalar_lea.hbm %s0, %s156
          %s159 = sshll.u32 %s152, 4
          %s160 = int_to_ptr.vmem [resolvable:$true] %s159
          %162 = dma.hbm_to_vmem [thread:$0]  %s157, 128, %s160, %s149
        $region28: #{tpu_custom_call.1} parent=23 // pred_fallthru
          _
      $region24: #{tpu_custom_call.1} parent=5 // pred_fallthru
        _
      %p163 = scmp.le.s32.totalorder 1, %s16
      %p164 = scmp.lt.s32.totalorder %s16, 3
      %p165 = pnand %p163, %p164
      %p166 = pneg %p165
      // Predicated region
      $region29: #{tpu_custom_call.1} parent=5 // pred_check
        _
      $region30: #{tpu_custom_call.1} parent=5 // pred_check_branch
        %168 = sbr.rel (%p165) target = $region32
      $region31: #{tpu_custom_call.1} parent=5 // pred_region
        %s169 = ssub.s32 %s16, 1
        %s170 = sand.u32 %s29, 1
        %s171 = scalar_lea.sflag [#allocation3], %s170
        %s172 = sand.u32 %s29, 1
        %s173 = smul.addr %s172, 8
        %s174 = scalar_lea.vmem [#allocation2], %s173
        // Predicated region
        $region33: #{tpu_custom_call.1} parent=31 // pred_check
          %p175 = pneg %p42
        $region34: #{tpu_custom_call.1} parent=31 // pred_check_branch
          %177 = sbr.rel (%p175) target = $region36
        $region35: #{tpu_custom_call.1} parent=31 // pred_region
          %178 = dma.done %s171, 128
        $region36: #{tpu_custom_call.1} parent=31 // pred_fallthru
          _
        // Predicated region
        $region37: #{tpu_custom_call.1} parent=31 // pred_check
          %p179 = pneg %p63
        $region38: #{tpu_custom_call.1} parent=31 // pred_check_branch
          %181 = sbr.rel (%p179) target = $region40
        $region39: #{tpu_custom_call.1} parent=31 // pred_region
          %182 = dma.done [#allocation6], 256
        $region40: #{tpu_custom_call.1} parent=31 // pred_fallthru
          _
        %s183 = sand.u32 %s29, 1
        %s184 = scalar_lea.sflag [#allocation3], %s183
        %s185 = sand.u32 %s29, 1
        %s186 = smul.addr %s185, 8
        %s187 = scalar_lea.vmem [#allocation2], %s186
        %p188 = pneg %p42
        %p189 = pneg %p39
        %p190 = pneg %p63
        %p191 = pneg %p60
        %p192 = pneg %p84
        %p193 = pneg %p81
        %p194 = pneg %p110
        %p195 = pneg %p107
        %s196 = sand.u32 %s97, 1
        %s197 = scalar_lea.sflag [#allocation4], %s196
        %s198 = sand.u32 %s97, 1
        %s199 = smul.addr %s198, 8
        %s200 = scalar_lea.vmem [#allocation7], %s199
        %v202 = vld [vmem:[%s174] sm:$0xff]
        %v203 = vpack.c.bf16 %v202, %v202
        %v204 = vld [vmem:[#allocation5] sm:$0xf]
        %v205 = vld [vmem:[#allocation5 + $0x4] sm:$0xf]
        %v206 = vld [vmem:[#allocation5 + $0x8] sm:$0xf]
        %v207 = vld [vmem:[#allocation5 + $0xc] sm:$0xf]
        %v208 = vld [vmem:[%s2] sm:$0x1]
        %v210 = vlaneseq
        %v211 = vshrl.u32 %v210, 7
        %v212 = vsub.s32 0, %v211
        %v213 = vrot.slane %v208, %v212
        %v219 = vunpack.c.l.b16 %v204
        %v220 = vunpack.c.l.b16 %v205
        %v221 = vunpack.c.l.b16 %v206
        %v222 = vunpack.c.l.b16 %v207
        %v223 = vpack.c.b16 %v220, %v219
        %v224 = vpack.c.b16 %v222, %v221
        %vm227 = vcmask 261120
        %v229 = vsel %vm227, %v203, 0
        %231 = vmatprep.subr.bf16.mxu0 0
        %232 = vmatpush1.bf16.msra.mxu0 %v223
        %233 = vmatprep.subr.bf16.mxu0 0
        %234 = vmatpush1.bf16.msra.mxu0 %v224
        %235 = vmatprep.subr.bf16.mxu0 0
        %236 = vmatpush1.bf16.msra.mxu0 0
        %237 = vmatprep.subr.bf16.mxu0 0
        %238 = vmatpush1.bf16.msra.mxu0 0
        %239 = vmatprep.subr.bf16.mxu0 0
        %240 = vmatpush1.bf16.msra.mxu0 0
        %241 = vmatprep.subr.bf16.mxu0 0
        %242 = vmatpush1.bf16.msra.mxu0 0
        %243 = vmatprep.subr.bf16.mxu0 0
        %244 = vmatpush1.bf16.msra.mxu0 0
        %245 = vmatprep.subr.bf16.mxu0 0
        %246 = vmatpush1.bf16.msra.mxu0 0
        %247 = vmatprep.subr.bf16.mxu0 0
        %248 = vmatpush1.bf16.msra.mxu0 0
        %249 = vmatprep.subr.bf16.mxu0 0
        %250 = vmatpush1.bf16.msra.mxu0 0
        %251 = vmatprep.subr.bf16.mxu0 0
        %252 = vmatpush1.bf16.msra.mxu0 0
        %253 = vmatprep.subr.bf16.mxu0 0
        %254 = vmatpush1.bf16.msra.mxu0 0
        %255 = vmatprep.subr.bf16.mxu0 0
        %256 = vmatpush1.bf16.msra.mxu0 0
        %257 = vmatprep.subr.bf16.mxu0 0
        %258 = vmatpush1.bf16.msra.mxu0 0
        %259 = vmatprep.subr.bf16.mxu0 0
        %260 = vmatpush1.bf16.msra.mxu0 0
        %261 = vmatprep.subr.bf16.mxu0 0
        %262 = vmatpush1.bf16.msra.mxu0 0
        %263 = vmatprep.mubr.bf16.mxu0 0
        %264 = vmatmul.mubr.bf16.gmra.mrb[0].mxu0 %v229
        %v265 = vpop.f32.mrb[0].mxu0
        %v266 = vadd.f32 %v213, %v265
        %v267 = vpop.f32.mrb[0].mxu0
        %v268 = vpop.f32.mrb[0].mxu0
        %v269 = vpop.f32.mrb[0].mxu0
        %270 = vdwg.mxu0
        %v271 = vlaneseq
        %v272 = vshrl.u32 %v271, 7
        %v273 = vlaneseq
        %v274 = vand.u32 %v273, 127
        %vm275 = vcmp.le.s32.totalorder %v274, %v272
        %v276 = vpack.c.bf16 %v266, %v266
        %278 = vrot.lane.b32.xlu0 %v276, 96
        %v279 = vpop.permute.xlu0 %278
        %v281 = vsel %vm227, %v279, 0
        %v284 = vsel %vm227, %v276, 0
        %286 = vmatprep.subr.bf16.mxu0 0
        %287 = vmatpush1.bf16.xpose.msra.mxu0 %v284
        %288 = vmatprep.subr.bf16.mxu0 0
        %289 = vmatpush1.bf16.xpose.msra.mxu0 0
        %290 = vmatprep.subr.bf16.mxu0 0
        %291 = vmatpush1.bf16.xpose.msra.mxu0 0
        %292 = vmatprep.subr.bf16.mxu0 0
        %293 = vmatpush1.bf16.xpose.msra.mxu0 0
        %294 = vmatprep.subr.bf16.mxu0 0
        %295 = vmatpush1.bf16.xpose.msra.mxu0 0
        %296 = vmatprep.subr.bf16.mxu0 0
        %297 = vmatpush1.bf16.xpose.msra.mxu0 0
        %298 = vmatprep.subr.bf16.mxu0 0
        %299 = vmatpush1.bf16.xpose.msra.mxu0 0
        %300 = vmatprep.subr.bf16.mxu0 0
        %301 = vmatpush1.bf16.xpose.msra.mxu0 0
        %302 = vmatprep.subr.bf16.mxu0 0
        %303 = vmatpush1.bf16.xpose.msra.mxu0 0
        %304 = vmatprep.subr.bf16.mxu0 0
        %305 = vmatpush1.bf16.xpose.msra.mxu0 0
        %306 = vmatprep.subr.bf16.mxu0 0
        %307 = vmatpush1.bf16.xpose.msra.mxu0 0
        %308 = vmatprep.subr.bf16.mxu0 0
        %309 = vmatpush1.bf16.xpose.msra.mxu0 0
        %310 = vmatprep.subr.bf16.mxu0 0
        %311 = vmatpush1.bf16.xpose.msra.mxu0 0
        %312 = vmatprep.subr.bf16.mxu0 0
        %313 = vmatpush1.bf16.xpose.msra.mxu0 0
        %314 = vmatprep.subr.bf16.mxu0 0
        %315 = vmatpush1.bf16.xpose.msra.mxu0 0
        %316 = vmatprep.subr.bf16.mxu0 0
        %317 = vmatpush1.bf16.xpose.msra.mxu0 0
        %318 = vmatprep.mubr.bf16.mxu0 0
        %319 = vmatmul.mubr.bf16.gmra.mrb[0].mxu0 %v281
        %v320 = vpop.f32.mrb[0].mxu0
        %v321 = vadd.f32 0.0, %v320
        %v322 = vpop.f32.mrb[0].mxu0
        %v323 = vpop.f32.mrb[0].mxu0
        %v324 = vpop.f32.mrb[0].mxu0
        %325 = vdwg.mxu0
        %v326 = vsel %vm275, %v321, -1e+30
        %vm327 = vcmask 64512
        %v328 = vsel %vm327, %v326, -inf
        %329 = vmax.xlane.f32.xlu0 %v328
        %v330 = vpop.xlane.xlu0 %329
        %v331 = vsub.f32 %v326, %v330
        %v332 = vmul.f32 %v331, 1.442695
        %v333 = vpow.pop %v332
        %v334 = vsel %vm327, %v333, 0.0
        %335 = vadd.xlane.f32.xlu0 %v334
        %v336 = vpop.xlane.xlu0 %335
        %v337 = vrcp.pop %v336
        %v338 = vmul.f32 %v333, %v337
        %v339 = vpack.c.bf16 %v338, %v338
        %340 = vrot.lane.b32.xlu0 %v276, 64
        %v341 = vpop.permute.xlu0 %340
        %v343 = vsel %vm327, %v339, 0
        %vm345 = vcmask 1043456
        %v347 = vsel %vm345, %v341, 0
        %349 = vmatprep.subr.bf16.mxu0 0
        %350 = vmatpush1.bf16.msra.mxu0 %v347
        %351 = vmatprep.subr.bf16.mxu0 0
        %352 = vmatpush1.bf16.msra.mxu0 0
        %353 = vmatprep.subr.bf16.mxu0 0
        %354 = vmatpush1.bf16.msra.mxu0 0
        %355 = vmatprep.subr.bf16.mxu0 0
        %356 = vmatpush1.bf16.msra.mxu0 0
        %357 = vmatprep.subr.bf16.mxu0 0
        %358 = vmatpush1.bf16.msra.mxu0 0
        %359 = vmatprep.subr.bf16.mxu0 0
        %360 = vmatpush1.bf16.msra.mxu0 0
        %361 = vmatprep.subr.bf16.mxu0 0
        %362 = vmatpush1.bf16.msra.mxu0 0
        %363 = vmatprep.subr.bf16.mxu0 0
        %364 = vmatpush1.bf16.msra.mxu0 0
        %365 = vmatprep.subr.bf16.mxu0 0
        %366 = vmatpush1.bf16.msra.mxu0 0
        %367 = vmatprep.subr.bf16.mxu0 0
        %368 = vmatpush1.bf16.msra.mxu0 0
        %369 = vmatprep.subr.bf16.mxu0 0
        %370 = vmatpush1.bf16.msra.mxu0 0
        %371 = vmatprep.subr.bf16.mxu0 0
        %372 = vmatpush1.bf16.msra.mxu0 0
        %373 = vmatprep.subr.bf16.mxu0 0
        %374 = vmatpush1.bf16.msra.mxu0 0
        %375 = vmatprep.subr.bf16.mxu0 0
        %376 = vmatpush1.bf16.msra.mxu0 0
        %377 = vmatprep.subr.bf16.mxu0 0
        %378 = vmatpush1.bf16.msra.mxu0 0
        %379 = vmatprep.subr.bf16.mxu0 0
        %380 = vmatpush1.bf16.msra.mxu0 0
        %381 = vmatprep.mubr.bf16.mxu0 0
        %382 = vmatmul.mubr.bf16.gmra.mrb[0].mxu0 %v343
        %v383 = vpop.f32.mrb[0].mxu0
        %v384 = vadd.f32 0.0, %v383
        %v385 = vpop.f32.mrb[0].mxu0
        %v386 = vpop.f32.mrb[0].mxu0
        %v387 = vpop.f32.mrb[0].mxu0
        %388 = vdwg.mxu0
        %389 = vst.msk [vmem:[%s200] sm:$0xff] %vm227, %v384
        %s390 = sand.u32 %s97, 1
        %s391 = scalar_lea.sflag [#allocation4], %s390
        %s392 = sand.u32 %s97, 1
        %s393 = smul.addr %s392, 8
        %s394 = scalar_lea.vmem [#allocation7], %s393
        // Predicated region
        $region41: #{tpu_custom_call.1} parent=31 // pred_check
          %p395 = pneg %p107
        $region42: #{tpu_custom_call.1} parent=31 // pred_check_branch
          %397 = sbr.rel (%p395) target = $region44
        $region43: #{tpu_custom_call.1} parent=31 // pred_region
          %s399 = ssub.s32 128, 128
          %400 = vsyncadd %s391, %s399
          %s401 = smul.addr %s21, 128
          %s402 = scalar_lea.hbm %s3, %s401
          %s404 = sshll.u32 %s394, 4
          %s405 = int_to_ptr.vmem [resolvable:$true] %s404
          %407 = dma.vmem_to_hbm [thread:$0]  %s405, 128, %s402, %s391
        $region44: #{tpu_custom_call.1} parent=31 // pred_fallthru
          _
      $region32: #{tpu_custom_call.1} parent=5 // pred_fallthru
        _
      %p408 = scmp.le.s32.totalorder 2, %s16
      // Predicated region
      $region45: #{tpu_custom_call.1} parent=5 // pred_check
        %p409 = pneg %p408
      $region46: #{tpu_custom_call.1} parent=5 // pred_check_branch
        %411 = sbr.rel (%p409) target = $region48
      $region47: #{tpu_custom_call.1} parent=5 // pred_region
        %s412 = ssub.s32 %s16, 2
        // Predicated region
        $region49: #{tpu_custom_call.1} parent=47 // pred_check
          %p413 = pneg %p113
        $region50: #{tpu_custom_call.1} parent=47 // pred_check_branch
          %415 = sbr.rel (%p413) target = $region52
        $region51: #{tpu_custom_call.1} parent=47 // pred_region
          %s416 = sand.u32 %s98, 1
          %s417 = scalar_lea.sflag [#allocation4], %s416
          %s418 = sand.u32 %s98, 1
          %s419 = smul.addr %s418, 8
          %s420 = scalar_lea.vmem [#allocation7], %s419
          %421 = dma.done %s417, 128
        $region52: #{tpu_custom_call.1} parent=47 // pred_fallthru
          _
      $region48: #{tpu_custom_call.1} parent=5 // pred_fallthru
        _
    $region6: #{tpu_custom_call.1} parent=1 // loop_footer
      %s20 = sadd.s32 1, %s16
    $region7: #{tpu_custom_call.1} parent=1 // loop_footer_branch
      %15 = sbr.rel target = $region3
    $region8: #{tpu_custom_call.1} parent=1 // loop_exit
      _
    %422 = vsyncpa [#allocation3], 1
    %s423 = scalar_lea.sflag [#allocation3], 1
    %424 = vsyncpa %s423, 1
    %425 = vsyncpa [#allocation6], 1
    %426 = vsyncpa [#allocation4], 1
    %s427 = scalar_lea.sflag [#allocation4], 1
    %428 = vsyncpa %s427, 1

</llo_original>
